<compile_context>
chip_gen: v7x
topology: tpu7x:2x2x1
jax: 0.10.0
libtpu: 0.0.40
codegen_flags: <defaults>
</compile_context>

<pallas_src>
import numpy as np
import jax
import jax.numpy as jnp
from jax import lax
from jax.experimental import pallas as pl
from jax.experimental.pallas import tpu as pltpu

# ----------------------- hyper-parameters (small, deterministic) -------------
BATCH       = 2
ACTION_SIZE = 4      # action_size
INPUT_SIZE  = 4      # input_size (Conv1d in_channels)
FEATURE_SEQ = 12     # feature_seq
HIDDEN      = 32     # hidden_size (length fed into the conv stack)
CONV_OUT    = 8      # conv_out_channels
KSIZE       = 3      # kernel_size
STRIDE      = 1      # conv stride
MP_K        = 2      # maxpool_kernel
MP_S        = 2      # maxpool_stride
RELU_SLOPE  = 0.01   # LeakyReLU negative slope
BN_EPS      = 1e-5

# TODO(synk): STRIDE > 1 would need strided lane gathers (roll + select); this
# kernel assumes STRIDE == 1 (guarded here instead of carrying dead code).
assert STRIDE == 1

def _out_len(l, k, s):
    return (l - k) // s + 1

L0 = HIDDEN
L1 = _out_len(L0, KSIZE, STRIDE)       # after conv1
L2 = _out_len(L1, KSIZE, STRIDE)       # after conv2
L3 = _out_len(L2, MP_K, MP_S)          # after maxpool
SPAN = L2 - MP_K + 1                   # valid sliding-max positions (>= (L3-1)*MP_S + 1)
TO_LINEAR = CONV_OUT * L3              # == _num_flat_features()

NIN = FEATURE_SEQ + ACTION_SIZE + 1    # fc_in in_features + folded-bias ones column
RI  = BATCH * INPUT_SIZE               # batch-stacked rows entering conv1
RC  = BATCH * CONV_OUT                 # batch-stacked conv output rows

# ----------------- packed weight-slab layout (one DMA for all weights) -------
def _align8(n):
    return ((n + 7) // 8) * 8

OFF_W1     = 0                          # (NIN, HIDDEN)          fc_in weight^T + bias row
OFF_C1     = _align8(OFF_W1 + NIN)      # (RC, KSIZE*RI)         conv1 per-tap block-diag (BN-scaled)
OFF_C2     = _align8(OFF_C1 + RC)       # (RC, KSIZE*RC)         conv2 per-tap block-diag (BN-scaled)
OFF_AUX    = _align8(OFF_C2 + RC)       # (RC, 2+SPAN)           [t1 | t2 | upsampled decision weights]
OFF_SEL    = _align8(OFF_AUX + RC)      # (8, RC)                static per-batch row-group selector
SLAB_ROWS  = _align8(OFF_SEL + 8)       # 80
SLAB_LANES = 128
assert KSIZE * RI <= SLAB_LANES and KSIZE * RC <= SLAB_LANES and 2 + SPAN <= SLAB_LANES


# ----------------------------- kernel helpers --------------------------------
def _leaky(x):
    return jnp.where(x >= 0, x, RELU_SLOPE * x)


# --------------------------------- kernel ------------------------------------
def qnet_kernel(x_ref, w_ref, q_ref):
    # Static views into the single packed weight slab (static slices are zero-cost).
    w1   = w_ref[OFF_W1:OFF_W1 + NIN, 0:HIDDEN]              # (NIN, H)
    wc1  = w_ref[OFF_C1:OFF_C1 + RC, 0:KSIZE * RI]            # (RC, K*RI)
    wc2  = w_ref[OFF_C2:OFF_C2 + RC, 0:KSIZE * RC]            # (RC, K*RC)
    aux  = w_ref[OFF_AUX:OFF_AUX + RC, 0:2 + SPAN]            # (RC, 2+SPAN)
    sel8 = w_ref[OFF_SEL:OFF_SEL + 8, 0:RC]                   # (8, RC)

    # fc_in: Linear bias folded via the trailing ones column of x; Dropout = identity.
    h = _leaky(jnp.dot(x_ref[...], w1, preferred_element_type=jnp.float32))   # (RI, H)

    # Conv1d #1: K accumulated per-tap MXU dots (block-diagonal over batch, BN scale
    # pre-folded into the weights), then BN shift (conv bias folded) + LeakyReLU.
    y = jnp.dot(wc1[:, 0:RI], h[:, 0:L1], preferred_element_type=jnp.float32)
    for k in range(1, KSIZE):
        y = y + jnp.dot(wc1[:, k * RI:(k + 1) * RI], h[:, k:k + L1],
                        preferred_element_type=jnp.float32)
    y = _leaky(y + aux[:, 0:1])                                                # (RC, L1)

    # Conv1d #2 (same scheme).
    z = jnp.dot(wc2[:, 0:RC], y[:, 0:L2], preferred_element_type=jnp.float32)
    for k in range(1, KSIZE):
        z = z + jnp.dot(wc2[:, k * RC:(k + 1) * RC], y[:, k:k + L2],
                        preferred_element_type=jnp.float32)
    z = _leaky(z + aux[:, 1:2])                                                # (RC, L2)

    # MaxPool1d(MP_K, MP_S): pairwise max of shifted lane slices.  The stride-MP_S
    # downsample + flatten + decision matmul are pre-folded into aux[:, 2:]
    # (zeros at non-selected columns), so no mask / -inf broadcast is needed.
    m = z[:, 0:SPAN]
    for j in range(1, MP_K):
        m = jnp.maximum(m, z[:, j:j + SPAN])                                   # (RC, SPAN)

    # decision_layer (conv part): elementwise weights, per-batch row-group reduce via
    # the precomputed selector, lane reduce, and one dense (8,128) unmasked store.
    prod = m * aux[:, 2:2 + SPAN]                                              # (RC, SPAN)
    qb = jnp.dot(sel8, prod, preferred_element_type=jnp.float32)               # (8, SPAN)
    q_ref[...] = jnp.broadcast_to(jnp.sum(qb, axis=1, keepdims=True), q_ref.shape)


# ----------------- one-time host-side packing (off the hot path) -------------
def pack_params(params):
    """Pack every weight-side operand into ONE lane-padded f32 slab. Call once per
    parameter update; the result is reused by every forward call."""
    f32 = jnp.float32
    B = BATCH

    # fc_in weight^T with its bias as an extra trailing row (folded via ones column of x).
    w1_aug = jnp.concatenate([params["w1"].T, params["b1"][None, :]], axis=0)   # (NIN, H)

    # BatchNorm1d(eval) folded with the conv bias: y_bn = y_conv * s + t.
    s1 = params["bn1_gamma"] / jnp.sqrt(params["bn1_var"] + BN_EPS)
    t1 = params["bn1_beta"] + (params["bc1"] - params["bn1_mean"]) * s1
    s2 = params["bn2_gamma"] / jnp.sqrt(params["bn2_var"] + BN_EPS)
    t2 = params["bn2_beta"] + (params["bc2"] - params["bn2_mean"]) * s2

    # Per-tap block-diagonal conv weights (batch elements stay independent), with the
    # BN scale pre-multiplied so the kernel only adds the shift.
    eye_b = jnp.eye(B, dtype=f32)
    wc1_s = params["wc1"] * s1[:, None, None]          # (C_out, C_in, K)
    wc2_s = params["wc2"] * s2[:, None, None]          # (C_out, C_out, K)
    wc1_taps = jnp.einsum("ock,bd->kbodc", wc1_s, eye_b).reshape(KSIZE, RC, RI)
    wc2_taps = jnp.einsum("ock,bd->kbodc", wc2_s, eye_b).reshape(KSIZE, RC, RC)
    wc1_lanes = jnp.transpose(wc1_taps, (1, 0, 2)).reshape(RC, KSIZE * RI)
    wc2_lanes = jnp.transpose(wc2_taps, (1, 0, 2)).reshape(RC, KSIZE * RC)

    # Decision weights (conv part), upsampled so maxpool's stride-downsample, the
    # flatten, and the decision dot collapse to elementwise multiply + reduce.
    wd = params["wd"]
    wdc = wd[:, :TO_LINEAR].reshape(CONV_OUT, L3)               # torch .view(B, -1) order
    wdc_up = jnp.zeros((CONV_OUT, SPAN), f32).at[:, jnp.arange(L3) * MP_S].set(wdc)

    # Static per-batch row-group selector (replaces the in-kernel iota/compare build).
    sel = np.zeros((8, RC), np.float32)
    for b in range(B):
        sel[b, b * CONV_OUT:(b + 1) * CONV_OUT] = 1.0

    slab = jnp.zeros((SLAB_ROWS, SLAB_LANES), f32)
    slab = slab.at[OFF_W1:OFF_W1 + NIN, 0:HIDDEN].set(w1_aug)
    slab = slab.at[OFF_C1:OFF_C1 + RC, 0:KSIZE * RI].set(wc1_lanes)
    slab = slab.at[OFF_C2:OFF_C2 + RC, 0:KSIZE * RC].set(wc2_lanes)
    slab = slab.at[OFF_AUX:OFF_AUX + RC, 0:1].set(jnp.tile(t1, B)[:, None])
    slab = slab.at[OFF_AUX:OFF_AUX + RC, 1:2].set(jnp.tile(t2, B)[:, None])
    slab = slab.at[OFF_AUX:OFF_AUX + RC, 2:2 + SPAN].set(jnp.tile(wdc_up, (B, 1)))
    slab = slab.at[OFF_SEL:OFF_SEL + 8, 0:RC].set(jnp.asarray(sel))

    return {
        "slab": slab,                                        # (80, 128) f32
        "wd_prev": wd[:, TO_LINEAR:].T.astype(f32),          # (A, 1) prev_action weights
        "bd": params["bd"].astype(f32),                      # (1,)   decision bias
    }


# ------------------------------- hot-path forward -----------------------------
@jax.jit
def qnetwork_cnn_forward(state, action, prev_action, slab, wd_prev, bd):
    """state: (B, input_size, feature_seq); action, prev_action: (B, action_size)."""
    B = state.shape[0]
    f32 = jnp.float32
    # fc_in input rows: [state | action broadcast over channels | 1], batch-stacked.
    a_b = jnp.broadcast_to(action.astype(f32)[:, None, :], (B, INPUT_SIZE, ACTION_SIZE))
    ones = jnp.ones((B, INPUT_SIZE, 1), f32)
    x_aug = jnp.concatenate([state.astype(f32), a_b, ones], axis=2).reshape(
        B * INPUT_SIZE, NIN)

    # Grid-less single-program call: two VMEM-resident operands, one dense output block.
    # NOTE(v7x): if B grows, add a leading "parallel" grid axis over batch-stacked row
    # blocks (multiples of 8 rows) so the two TensorCores split the batch.
    q8 = pl.pallas_call(
        qnet_kernel,
        out_shape=jax.ShapeDtypeStruct((8, SLAB_LANES), f32),
        in_specs=[pl.BlockSpec(memory_space=pltpu.MemorySpace.VMEM),
                  pl.BlockSpec(memory_space=pltpu.MemorySpace.VMEM)],
        out_specs=pl.BlockSpec(memory_space=pltpu.MemorySpace.VMEM),
    )(x_aug, slab)

    # prev_action contribution + decision bias: tiny (B,A)x(A,1) dot kept in fused XLA.
    q_prev = prev_action.astype(f32) @ wd_prev + bd[None, :]
    return q8[:B, 0:1] + q_prev


# -------------------------- deterministic parameters --------------------------
def init_params(key):
    ks = jax.random.split(key, 16)

    def u(k, shape, fan_in):
        bound = 1.0 / np.sqrt(fan_in)
        return jax.random.uniform(k, shape, jnp.float32, -bound, bound)

    fan_fc = FEATURE_SEQ + ACTION_SIZE
    fan_c1 = INPUT_SIZE * KSIZE
    fan_c2 = CONV_OUT * KSIZE
    fan_d = TO_LINEAR + ACTION_SIZE
    return {
        "w1":  u(ks[0], (HIDDEN, fan_fc), fan_fc),
        "b1":  u(ks[1], (HIDDEN,), fan_fc),
        "wc1": u(ks[2], (CONV_OUT, INPUT_SIZE, KSIZE), fan_c1),
        "bc1": u(ks[3], (CONV_OUT,), fan_c1),
        "wc2": u(ks[4], (CONV_OUT, CONV_OUT, KSIZE), fan_c2),
        "bc2": u(ks[5], (CONV_OUT,), fan_c2),
        "wd":  u(ks[6], (1, fan_d), fan_d),
        "bd":  u(ks[7], (1,), fan_d),
        # BatchNorm1d affine params + running stats (eval mode), deterministic
        "bn1_gamma": 1.0 + 0.1 * jax.random.normal(ks[8], (CONV_OUT,), jnp.float32),
        "bn1_beta":  0.1 * jax.random.normal(ks[9], (CONV_OUT,), jnp.float32),
        "bn1_mean":  0.1 * jax.random.normal(ks[10], (CONV_OUT,), jnp.float32),
        "bn1_var":   jax.random.uniform(ks[11], (CONV_OUT,), jnp.float32, 0.5, 1.5),
        "bn2_gamma": 1.0 + 0.1 * jax.random.normal(ks[12], (CONV_OUT,), jnp.float32),
        "bn2_beta":  0.1 * jax.random.normal(ks[13], (CONV_OUT,), jnp.float32),
        "bn2_mean":  0.1 * jax.random.normal(ks[14], (CONV_OUT,), jnp.float32),
        "bn2_var":   jax.random.uniform(ks[15], (CONV_OUT,), jnp.float32, 0.5, 1.5),
    }


# --------------------------- pure-JAX reference --------------------------------
def reference_forward(state, action, prev_action, params):
    hi = lax.Precision.HIGHEST
    B = state.shape[0]
    a_b = jnp.broadcast_to(action[:, None, :], (B, INPUT_SIZE, ACTION_SIZE))
    x = jnp.concatenate([state, a_b], axis=2)
    h = jnp.einsum("bcf,hf->bch", x, params["w1"], precision=hi) + params["b1"][None, None, :]
    h = jnp.where(h >= 0, h, RELU_SLOPE * h)

    def conv_bn_act(x, w, b, gamma, beta, mean, var):
        y = lax.conv_general_dilated(x, w, (STRIDE,), "VALID",
                                     dimension_numbers=("NCH", "OIH", "NCH"),
                                     precision=hi)
        y = y + b[None, :, None]
        scale = gamma / jnp.sqrt(var + BN_EPS)
        y = y * scale[None, :, None] + (beta - mean * scale)[None, :, None]
        return jnp.where(y >= 0, y, RELU_SLOPE * y)

    y = conv_bn_act(h, params["wc1"], params["bc1"], params["bn1_gamma"],
                    params["bn1_beta"], params["bn1_mean"], params["bn1_var"])
    y = conv_bn_act(y, params["wc2"], params["bc2"], params["bn2_gamma"],
                    params["bn2_beta"], params["bn2_mean"], params["bn2_var"])
    y = lax.reduce_window(y, -jnp.inf, lax.max, (1, 1, MP_K), (1, 1, MP_S), "VALID")
    flat = y.reshape(B, -1)
    xcat = jnp.concatenate([flat, prev_action], axis=1)
    return jnp.dot(xcat, params["wd"].T, precision=hi) + params["bd"][None, :]


# --------------------------------- main ----------------------------------------
if __name__ == "__main__":
    key = jax.random.PRNGKey(0)
    kp, kstate, kact, kprev = jax.random.split(key, 4)
    params = init_params(kp)

    # One-time weight packing (off the per-call hot path).
    packed = pack_params(params)
    packed = jax.tree_util.tree_map(jax.block_until_ready, packed)

    state = jax.random.normal(kstate, (BATCH, INPUT_SIZE, FEATURE_SEQ), jnp.float32)
    action = jax.random.normal(kact, (BATCH, ACTION_SIZE), jnp.float32)
    prev_action = jax.random.normal(kprev, (BATCH, ACTION_SIZE), jnp.float32)

    q = qnetwork_cnn_forward(state, action, prev_action,
                             packed["slab"], packed["wd_prev"], packed["bd"])
    q = jax.block_until_ready(q)

    q_ref = reference_forward(state, action, prev_action, params)
    assert q.shape == (BATCH, 1)
    np.testing.assert_allclose(np.asarray(q), np.asarray(q_ref), rtol=2e-2, atol=2e-2)
    print("KERNEL_OK")
</pallas_src>

<mosaic_0001>
module attributes {stable_mosaic.version = 11 : i64} {
  func.func @qnet_kernel(%arg0: memref<8x17xf32, #tpu.memory_space<vmem>>, %arg1: memref<80x128xf32, #tpu.memory_space<vmem>>, %arg2: memref<8x128xf32, #tpu.memory_space<vmem>>) attributes {dimension_semantics = [], scalar_prefetch = 0 : i64, scratch_operands = 0 : i64, tpu.core_type = #tpu.core_type<tc>} {
    %c0 = arith.constant 0 : index
    %c0_0 = arith.constant 0 : index
    %0 = vector.load %arg1[%c0, %c0_0] : memref<80x128xf32, #tpu.memory_space<vmem>>, vector<17x32xf32>
    %c24 = arith.constant 24 : index
    %c0_1 = arith.constant 0 : index
    %1 = vector.load %arg1[%c24, %c0_1] : memref<80x128xf32, #tpu.memory_space<vmem>>, vector<16x24xf32>
    %c40 = arith.constant 40 : index
    %c0_2 = arith.constant 0 : index
    %2 = vector.load %arg1[%c40, %c0_2] : memref<80x128xf32, #tpu.memory_space<vmem>>, vector<16x48xf32>
    %c56 = arith.constant 56 : index
    %c0_3 = arith.constant 0 : index
    %3 = vector.load %arg1[%c56, %c0_3] : memref<80x128xf32, #tpu.memory_space<vmem>>, vector<16x29xf32>
    %c72 = arith.constant 72 : index
    %c0_4 = arith.constant 0 : index
    %4 = vector.load %arg1[%c72, %c0_4] : memref<80x128xf32, #tpu.memory_space<vmem>>, vector<8x16xf32>
    %c0_5 = arith.constant 0 : index
    %c0_6 = arith.constant 0 : index
    %5 = vector.load %arg0[%c0_5, %c0_6] : memref<8x17xf32, #tpu.memory_space<vmem>>, vector<8x17xf32>
    %cst = arith.constant dense<0.000000e+00> : vector<8x32xf32>
    %6 = tpu.matmul %5, %0, %cst {dimension_numbers = #tpu.dot_dimension_numbers<[1], [0], [0], [1], [0, 0, 1, 1], [], []>} : vector<8x17xf32>, vector<17x32xf32>, vector<8x32xf32> -> vector<8x32xf32>
    %cst_7 = arith.constant 0.000000e+00 : f32
    %7 = vector.broadcast %cst_7 : f32 to vector<8x32xf32>
    %8 = arith.cmpf oge, %6, %7 : vector<8x32xf32>
    %cst_8 = arith.constant 0.00999999977 : f32
    %9 = vector.broadcast %cst_8 : f32 to vector<8x32xf32>
    %10 = arith.mulf %9, %6 : vector<8x32xf32>
    %11 = arith.select %8, %6, %10 : vector<8x32xi1>, vector<8x32xf32>
    %12 = vector.extract_strided_slice %1 {offsets = [0, 0], sizes = [16, 8], strides = [1, 1]} : vector<16x24xf32> to vector<16x8xf32>
    %13 = vector.extract_strided_slice %11 {offsets = [0, 0], sizes = [8, 30], strides = [1, 1]} : vector<8x32xf32> to vector<8x30xf32>
    %cst_9 = arith.constant dense<0.000000e+00> : vector<16x30xf32>
    %14 = tpu.matmul %12, %13, %cst_9 {dimension_numbers = #tpu.dot_dimension_numbers<[1], [0], [0], [1], [0, 0, 1, 1], [], []>} : vector<16x8xf32>, vector<8x30xf32>, vector<16x30xf32> -> vector<16x30xf32>
    %15 = vector.extract_strided_slice %1 {offsets = [0, 8], sizes = [16, 8], strides = [1, 1]} : vector<16x24xf32> to vector<16x8xf32>
    %16 = vector.extract_strided_slice %11 {offsets = [0, 1], sizes = [8, 30], strides = [1, 1]} : vector<8x32xf32> to vector<8x30xf32>
    %cst_10 = arith.constant dense<0.000000e+00> : vector<16x30xf32>
    %17 = tpu.matmul %15, %16, %cst_10 {dimension_numbers = #tpu.dot_dimension_numbers<[1], [0], [0], [1], [0, 0, 1, 1], [], []>} : vector<16x8xf32>, vector<8x30xf32>, vector<16x30xf32> -> vector<16x30xf32>
    %18 = arith.addf %14, %17 : vector<16x30xf32>
    %19 = vector.extract_strided_slice %1 {offsets = [0, 16], sizes = [16, 8], strides = [1, 1]} : vector<16x24xf32> to vector<16x8xf32>
    %20 = vector.extract_strided_slice %11 {offsets = [0, 2], sizes = [8, 30], strides = [1, 1]} : vector<8x32xf32> to vector<8x30xf32>
    %cst_11 = arith.constant dense<0.000000e+00> : vector<16x30xf32>
    %21 = tpu.matmul %19, %20, %cst_11 {dimension_numbers = #tpu.dot_dimension_numbers<[1], [0], [0], [1], [0, 0, 1, 1], [], []>} : vector<16x8xf32>, vector<8x30xf32>, vector<16x30xf32> -> vector<16x30xf32>
    %22 = arith.addf %18, %21 : vector<16x30xf32>
    %23 = vector.extract_strided_slice %3 {offsets = [0, 0], sizes = [16, 1], strides = [1, 1]} : vector<16x29xf32> to vector<16x1xf32>
    %24 = vector.broadcast %23 : vector<16x1xf32> to vector<16x30xf32>
    %25 = arith.addf %22, %24 : vector<16x30xf32>
    %cst_12 = arith.constant 0.000000e+00 : f32
    %26 = vector.broadcast %cst_12 : f32 to vector<16x30xf32>
    %27 = arith.cmpf oge, %25, %26 : vector<16x30xf32>
    %cst_13 = arith.constant 0.00999999977 : f32
    %28 = vector.broadcast %cst_13 : f32 to vector<16x30xf32>
    %29 = arith.mulf %28, %25 : vector<16x30xf32>
    %30 = arith.select %27, %25, %29 : vector<16x30xi1>, vector<16x30xf32>
    %31 = vector.extract_strided_slice %2 {offsets = [0, 0], sizes = [16, 16], strides = [1, 1]} : vector<16x48xf32> to vector<16x16xf32>
    %32 = vector.extract_strided_slice %30 {offsets = [0, 0], sizes = [16, 28], strides = [1, 1]} : vector<16x30xf32> to vector<16x28xf32>
    %cst_14 = arith.constant dense<0.000000e+00> : vector<16x28xf32>
    %33 = tpu.matmul %31, %32, %cst_14 {dimension_numbers = #tpu.dot_dimension_numbers<[1], [0], [0], [1], [0, 0, 1, 1], [], []>} : vector<16x16xf32>, vector<16x28xf32>, vector<16x28xf32> -> vector<16x28xf32>
    %34 = vector.extract_strided_slice %2 {offsets = [0, 16], sizes = [16, 16], strides = [1, 1]} : vector<16x48xf32> to vector<16x16xf32>
    %35 = vector.extract_strided_slice %30 {offsets = [0, 1], sizes = [16, 28], strides = [1, 1]} : vector<16x30xf32> to vector<16x28xf32>
    %cst_15 = arith.constant dense<0.000000e+00> : vector<16x28xf32>
    %36 = tpu.matmul %34, %35, %cst_15 {dimension_numbers = #tpu.dot_dimension_numbers<[1], [0], [0], [1], [0, 0, 1, 1], [], []>} : vector<16x16xf32>, vector<16x28xf32>, vector<16x28xf32> -> vector<16x28xf32>
    %37 = arith.addf %33, %36 : vector<16x28xf32>
    %38 = vector.extract_strided_slice %2 {offsets = [0, 32], sizes = [16, 16], strides = [1, 1]} : vector<16x48xf32> to vector<16x16xf32>
    %39 = vector.extract_strided_slice %30 {offsets = [0, 2], sizes = [16, 28], strides = [1, 1]} : vector<16x30xf32> to vector<16x28xf32>
    %cst_16 = arith.constant dense<0.000000e+00> : vector<16x28xf32>
    %40 = tpu.matmul %38, %39, %cst_16 {dimension_numbers = #tpu.dot_dimension_numbers<[1], [0], [0], [1], [0, 0, 1, 1], [], []>} : vector<16x16xf32>, vector<16x28xf32>, vector<16x28xf32> -> vector<16x28xf32>
    %41 = arith.addf %37, %40 : vector<16x28xf32>
    %42 = vector.extract_strided_slice %3 {offsets = [0, 1], sizes = [16, 1], strides = [1, 1]} : vector<16x29xf32> to vector<16x1xf32>
    %43 = vector.broadcast %42 : vector<16x1xf32> to vector<16x28xf32>
    %44 = arith.addf %41, %43 : vector<16x28xf32>
    %cst_17 = arith.constant 0.000000e+00 : f32
    %45 = vector.broadcast %cst_17 : f32 to vector<16x28xf32>
    %46 = arith.cmpf oge, %44, %45 : vector<16x28xf32>
    %cst_18 = arith.constant 0.00999999977 : f32
    %47 = vector.broadcast %cst_18 : f32 to vector<16x28xf32>
    %48 = arith.mulf %47, %44 : vector<16x28xf32>
    %49 = arith.select %46, %44, %48 : vector<16x28xi1>, vector<16x28xf32>
    %50 = vector.extract_strided_slice %49 {offsets = [0, 0], sizes = [16, 27], strides = [1, 1]} : vector<16x28xf32> to vector<16x27xf32>
    %51 = vector.extract_strided_slice %49 {offsets = [0, 1], sizes = [16, 27], strides = [1, 1]} : vector<16x28xf32> to vector<16x27xf32>
    %52 = arith.maximumf %50, %51 : vector<16x27xf32>
    %53 = vector.extract_strided_slice %3 {offsets = [0, 2], sizes = [16, 27], strides = [1, 1]} : vector<16x29xf32> to vector<16x27xf32>
    %54 = arith.mulf %52, %53 : vector<16x27xf32>
    %cst_19 = arith.constant dense<0.000000e+00> : vector<8x27xf32>
    %55 = tpu.matmul %4, %54, %cst_19 {dimension_numbers = #tpu.dot_dimension_numbers<[1], [0], [0], [1], [0, 0, 1, 1], [], []>} : vector<8x16xf32>, vector<16x27xf32>, vector<8x27xf32> -> vector<8x27xf32>
    %cst_20 = arith.constant dense<0.000000e+00> : vector<8xf32>
    %56 = vector.multi_reduction <add>, %55, %cst_20 [1] : vector<8x27xf32> to vector<8xf32>
    %57 = vector.shape_cast %56 : vector<8xf32> to vector<8x1xf32>
    %58 = vector.shape_cast %57 : vector<8x1xf32> to vector<8x1xf32>
    %59 = vector.broadcast %58 : vector<8x1xf32> to vector<8x128xf32>
    %c0_21 = arith.constant 0 : index
    %c0_22 = arith.constant 0 : index
    %60 = vector.load %arg2[%c0_21, %c0_22] : memref<8x128xf32, #tpu.memory_space<vmem>>, vector<8x128xf32>
    tpu.vector_store %arg2[%c0_21, %c0_22], %59 {strides = array<i32>} : memref<8x128xf32, #tpu.memory_space<vmem>>, vector<8x128xf32>,
    return
  }
}

</mosaic_0001>

<llo_original>
// kernel: qnetwork_cnn_forward.1
$region0: #{qnetwork_cnn_forward.1}
  #allocation0 [shape = 'u32[]', space=smem, size = 0x4, offset = 0x4, fixed_abs, tag = 'smem constant byte address 0x4 - core index']
  #allocation1 [shape = 'u32[144,128]{1,0:T(1,128)}', space=vmem, size = 0x12000, scoped, tag = 'internal scratch']
  %s0 = inlined_call_operand.vmem [shape: f32[8,17], index: 0, kind: input, shape index: {}]
  %s1 = inlined_call_operand.hbm [shape: f32[80,128], index: 1, kind: input, shape index: {}]
  %s2 = inlined_call_operand.vmem [shape: f32[8,128], index: 2, kind: output, shape index: {}]
  %s3 = sld [smem:[#allocation0]]
  $region22: #{qnetwork_cnn_forward.1} parent=0
    _
  %s5 = ssub.s32 1, %s3
  %s6 = scalar_select 0, %s5, %s3
  $region1: #{qnetwork_cnn_forward.1} parent=0
    #allocation2 [shape = 'u8[40960]{0}', space=vmem, size = 0xa000, scoped, tag = 'input window, operand 1, single buffered']
    #allocation3 [shape = 's32[1]{0}', space=sflag, size = 0x4, scoped, tag = 'scoped memory for qnetwork_cnn_forward.1']
    %7 = vsyncpa [#allocation3], 0
    // Predicated region
    $region2: #{qnetwork_cnn_forward.1} parent=1 // pred_check
      _
    $region3: #{qnetwork_cnn_forward.1} parent=1 // pred_check_branch
      %9 = sbr.rel (0) target = $region5
    $region4: #{qnetwork_cnn_forward.1} parent=1 // pred_region
      _
    $region5: #{qnetwork_cnn_forward.1} parent=1 // pred_fallthru
      _
    // Predicated region
    $region6: #{qnetwork_cnn_forward.1} parent=1 // pred_check
      _
    $region7: #{qnetwork_cnn_forward.1} parent=1 // pred_check_branch
      %11 = sbr.rel (0) target = $region9
    $region8: #{qnetwork_cnn_forward.1} parent=1 // pred_region
      %s13 = ssub.s32 1280, 1280
      %14 = vsyncadd [#allocation3], %s13
      %s15 = sshll.u32 [#allocation2], 4
      %s16 = int_to_ptr.vmem [resolvable:$true] %s15
      %21 = dma.hbm_to_vmem [thread:$0]  %s1, 1280, %s16, [#allocation3], 128, 128, 8
    $region9: #{qnetwork_cnn_forward.1} parent=1 // pred_fallthru
      _
    // Predicated region
    $region10: #{qnetwork_cnn_forward.1} parent=1 // pred_check
      _
    $region11: #{qnetwork_cnn_forward.1} parent=1 // pred_check_branch
      %23 = sbr.rel (0) target = $region13
    $region12: #{qnetwork_cnn_forward.1} parent=1 // pred_region
      %24 = dma.done [#allocation3], 1280
    $region13: #{qnetwork_cnn_forward.1} parent=1 // pred_fallthru
      _
    %v25 = vld [vmem:[#allocation2] sm:$0xff]
    %v26 = vld [vmem:[#allocation2 + $0x8] sm:$0xff]
    %v27 = vld [vmem:[#allocation2 + $0x10] sm:$0x1]
    %v28 = vld [vmem:[#allocation2 + $0x18] sm:$0xff]
    %v29 = vld [vmem:[#allocation2 + $0x20] sm:$0xff]
    %v30 = vld [vmem:[#allocation2 + $0x28] sm:$0xff]
    %v31 = vld [vmem:[#allocation2 + $0x30] sm:$0xff]
    %v32 = vld [vmem:[#allocation2 + $0x38] sm:$0xff]
    %v33 = vld [vmem:[#allocation2 + $0x40] sm:$0xff]
    %v34 = vld [vmem:[#allocation2 + $0x48] sm:$0xff]
    %v35 = vld [vmem:[%s0] sm:$0xff]
    %vm36 = vcmask 138240
    %v38 = vsel %vm36, %v35, 0
    %vm40 = vcmask 1040384
    %v42 = vsel %vm40, %v27, 0
    %44 = vmatprep.subr.mxu0 0.0
    %45 = vmatpush1.msra.mxu0 %v25
    %46 = vmatprep.subr.mxu0 0.0
    %47 = vmatpush1.msra.mxu0 %v26
    %48 = vmatprep.subr.mxu0 0.0
    %49 = vmatpush1.msra.mxu0 %v42
    %50 = vmatprep.subr.mxu0 0.0
    %51 = vmatpush1.msra.mxu0 0.0
    %52 = vmatprep.subr.mxu0 0.0
    %53 = vmatpush1.msra.mxu0 0.0
    %54 = vmatprep.subr.mxu0 0.0
    %55 = vmatpush1.msra.mxu0 0.0
    %56 = vmatprep.subr.mxu0 0.0
    %57 = vmatpush1.msra.mxu0 0.0
    %58 = vmatprep.subr.mxu0 0.0
    %59 = vmatpush1.msra.mxu0 0.0
    %60 = vmatprep.subr.mxu0 0.0
    %61 = vmatpush1.msra.mxu0 0.0
    %62 = vmatprep.subr.mxu0 0.0
    %63 = vmatpush1.msra.mxu0 0.0
    %64 = vmatprep.subr.mxu0 0.0
    %65 = vmatpush1.msra.mxu0 0.0
    %66 = vmatprep.subr.mxu0 0.0
    %67 = vmatpush1.msra.mxu0 0.0
    %68 = vmatprep.subr.mxu0 0.0
    %69 = vmatpush1.msra.mxu0 0.0
    %70 = vmatprep.subr.mxu0 0.0
    %71 = vmatpush1.msra.mxu0 0.0
    %72 = vmatprep.subr.mxu0 0.0
    %73 = vmatpush1.msra.mxu0 0.0
    %74 = vmatprep.subr.mxu0 0.0
    %75 = vmatpush1.msra.mxu0 0.0
    %76 = vmatprep.subr.mxu0 0.0
    %77 = vmatpush1.msra.mxu0 0.0
    %78 = vmatprep.subr.mxu0 0.0
    %79 = vmatpush1.msra.mxu0 0.0
    %80 = vmatprep.subr.mxu0 0.0
    %81 = vmatpush1.msra.mxu0 0.0
    %82 = vmatprep.subr.mxu0 0.0
    %83 = vmatpush1.msra.mxu0 0.0
    %84 = vmatprep.subr.mxu0 0.0
    %85 = vmatpush1.msra.mxu0 0.0
    %86 = vmatprep.subr.mxu0 0.0
    %87 = vmatpush1.msra.mxu0 0.0
    %88 = vmatprep.subr.mxu0 0.0
    %89 = vmatpush1.msra.mxu0 0.0
    %90 = vmatprep.subr.mxu0 0.0
    %91 = vmatpush1.msra.mxu0 0.0
    %92 = vmatprep.subr.mxu0 0.0
    %93 = vmatpush1.msra.mxu0 0.0
    %94 = vmatprep.subr.mxu0 0.0
    %95 = vmatpush1.msra.mxu0 0.0
    %96 = vmatprep.subr.mxu0 0.0
    %97 = vmatpush1.msra.mxu0 0.0
    %98 = vmatprep.subr.mxu0 0.0
    %99 = vmatpush1.msra.mxu0 0.0
    %100 = vmatprep.subr.mxu0 0.0
    %101 = vmatpush1.msra.mxu0 0.0
    %102 = vmatprep.subr.mxu0 0.0
    %103 = vmatpush1.msra.mxu0 0.0
    %104 = vmatprep.subr.mxu0 0.0
    %105 = vmatpush1.msra.mxu0 0.0
    %106 = vmatprep.subr.mxu0 0.0
    %107 = vmatpush1.msra.mxu0 0.0
    %108 = vmatprep.mubr.f32.mxu0 0.0
    %109 = vmatmul.mubr.f32.gmra.mrb[0].mxu0 %v38
    %v110 = vpop.f32.mrb[0].mxu0
    %v111 = vadd.f32 0.0, %v110
    %v112 = vpop.f32.mrb[0].mxu0
    %113 = vdwg.mxu0
    %vm114 = vcmp.ge.f32.partialorder %v111, 0.0
    %v115 = vmul.f32 %v111, 0.01
    %v116 = vsel %vm114, %v111, %v115
    %119 = vrot.lane.b32.xlu0 %v28, 120
    %v120 = vpop.permute.xlu0 %119
    %121 = vrot.lane.b32.xlu0 %v29, 120
    %v122 = vpop.permute.xlu0 %121
    %124 = vrot.lane.b32.xlu0 %v116, 127
    %v125 = vpop.permute.xlu0 %124
    %vm127 = vcmask 64512
    %v128 = vsel %vm127, %v120, 0
    %v130 = vsel %vm127, %v122, 0
    %132 = vmatprep.subr.mxu0 0.0
    %133 = vmatpush1.msra.mxu0 %v125
    %134 = vmatprep.subr.mxu0 0.0
    %135 = vmatpush1.msra.mxu0 0.0
    %136 = vmatprep.subr.mxu0 0.0
    %137 = vmatpush1.msra.mxu0 0.0
    %138 = vmatprep.subr.mxu0 0.0
    %139 = vmatpush1.msra.mxu0 0.0
    %140 = vmatprep.subr.mxu0 0.0
    %141 = vmatpush1.msra.mxu0 0.0
    %142 = vmatprep.subr.mxu0 0.0
    %143 = vmatpush1.msra.mxu0 0.0
    %144 = vmatprep.subr.mxu0 0.0
    %145 = vmatpush1.msra.mxu0 0.0
    %146 = vmatprep.subr.mxu0 0.0
    %147 = vmatpush1.msra.mxu0 0.0
    %148 = vmatprep.subr.mxu0 0.0
    %149 = vmatpush1.msra.mxu0 0.0
    %150 = vmatprep.subr.mxu0 0.0
    %151 = vmatpush1.msra.mxu0 0.0
    %152 = vmatprep.subr.mxu0 0.0
    %153 = vmatpush1.msra.mxu0 0.0
    %154 = vmatprep.subr.mxu0 0.0
    %155 = vmatpush1.msra.mxu0 0.0
    %156 = vmatprep.subr.mxu0 0.0
    %157 = vmatpush1.msra.mxu0 0.0
    %158 = vmatprep.subr.mxu0 0.0
    %159 = vmatpush1.msra.mxu0 0.0
    %160 = vmatprep.subr.mxu0 0.0
    %161 = vmatpush1.msra.mxu0 0.0
    %162 = vmatprep.subr.mxu0 0.0
    %163 = vmatpush1.msra.mxu0 0.0
    %164 = vmatprep.subr.mxu0 0.0
    %165 = vmatpush1.msra.mxu0 0.0
    %166 = vmatprep.subr.mxu0 0.0
    %167 = vmatpush1.msra.mxu0 0.0
    %168 = vmatprep.subr.mxu0 0.0
    %169 = vmatpush1.msra.mxu0 0.0
    %170 = vmatprep.subr.mxu0 0.0
    %171 = vmatpush1.msra.mxu0 0.0
    %172 = vmatprep.subr.mxu0 0.0
    %173 = vmatpush1.msra.mxu0 0.0
    %174 = vmatprep.subr.mxu0 0.0
    %175 = vmatpush1.msra.mxu0 0.0
    %176 = vmatprep.subr.mxu0 0.0
    %177 = vmatpush1.msra.mxu0 0.0
    %178 = vmatprep.subr.mxu0 0.0
    %179 = vmatpush1.msra.mxu0 0.0
    %180 = vmatprep.subr.mxu0 0.0
    %181 = vmatpush1.msra.mxu0 0.0
    %182 = vmatprep.subr.mxu0 0.0
    %183 = vmatpush1.msra.mxu0 0.0
    %184 = vmatprep.subr.mxu0 0.0
    %185 = vmatpush1.msra.mxu0 0.0
    %186 = vmatprep.subr.mxu0 0.0
    %187 = vmatpush1.msra.mxu0 0.0
    %188 = vmatprep.subr.mxu0 0.0
    %189 = vmatpush1.msra.mxu0 0.0
    %190 = vmatprep.subr.mxu0 0.0
    %191 = vmatpush1.msra.mxu0 0.0
    %192 = vmatprep.subr.mxu0 0.0
    %193 = vmatpush1.msra.mxu0 0.0
    %194 = vmatprep.subr.mxu0 0.0
    %195 = vmatpush1.msra.mxu0 0.0
    %196 = vmatprep.mubr.f32.mxu0 0.0
    %197 = vmatmul.mubr.f32.gmra.mrb[0].mxu0 %v128
    %v198 = vpop.f32.mrb[0].mxu0
    %v199 = vadd.f32 0.0, %v198
    %v200 = vpop.f32.mrb[0].mxu0
    %201 = vmatprep.mubr.f32.mxu0 0.0
    %202 = vmatmul.mubr.f32.gmra.mrb[0].mxu0 %v130
    %v203 = vpop.f32.mrb[0].mxu0
    %v204 = vadd.f32 0.0, %v203
    %v205 = vpop.f32.mrb[0].mxu0
    %206 = vdwg.mxu0
    %v207 = vsel %vm127, %v28, 0
    %v209 = vsel %vm127, %v29, 0
    %211 = vmatprep.subr.mxu0 0.0
    %212 = vmatpush1.msra.mxu0 %v116
    %213 = vmatprep.subr.mxu0 0.0
    %214 = vmatpush1.msra.mxu0 0.0
    %215 = vmatprep.subr.mxu0 0.0
    %216 = vmatpush1.msra.mxu0 0.0
    %217 = vmatprep.subr.mxu0 0.0
    %218 = vmatpush1.msra.mxu0 0.0
    %219 = vmatprep.subr.mxu0 0.0
    %220 = vmatpush1.msra.mxu0 0.0
    %221 = vmatprep.subr.mxu0 0.0
    %222 = vmatpush1.msra.mxu0 0.0
    %223 = vmatprep.subr.mxu0 0.0
    %224 = vmatpush1.msra.mxu0 0.0
    %225 = vmatprep.subr.mxu0 0.0
    %226 = vmatpush1.msra.mxu0 0.0
    %227 = vmatprep.subr.mxu0 0.0
    %228 = vmatpush1.msra.mxu0 0.0
    %229 = vmatprep.subr.mxu0 0.0
    %230 = vmatpush1.msra.mxu0 0.0
    %231 = vmatprep.subr.mxu0 0.0
    %232 = vmatpush1.msra.mxu0 0.0
    %233 = vmatprep.subr.mxu0 0.0
    %234 = vmatpush1.msra.mxu0 0.0
    %235 = vmatprep.subr.mxu0 0.0
    %236 = vmatpush1.msra.mxu0 0.0
    %237 = vmatprep.subr.mxu0 0.0
    %238 = vmatpush1.msra.mxu0 0.0
    %239 = vmatprep.subr.mxu0 0.0
    %240 = vmatpush1.msra.mxu0 0.0
    %241 = vmatprep.subr.mxu0 0.0
    %242 = vmatpush1.msra.mxu0 0.0
    %243 = vmatprep.subr.mxu0 0.0
    %244 = vmatpush1.msra.mxu0 0.0
    %245 = vmatprep.subr.mxu0 0.0
    %246 = vmatpush1.msra.mxu0 0.0
    %247 = vmatprep.subr.mxu0 0.0
    %248 = vmatpush1.msra.mxu0 0.0
    %249 = vmatprep.subr.mxu0 0.0
    %250 = vmatpush1.msra.mxu0 0.0
    %251 = vmatprep.subr.mxu0 0.0
    %252 = vmatpush1.msra.mxu0 0.0
    %253 = vmatprep.subr.mxu0 0.0
    %254 = vmatpush1.msra.mxu0 0.0
    %255 = vmatprep.subr.mxu0 0.0
    %256 = vmatpush1.msra.mxu0 0.0
    %257 = vmatprep.subr.mxu0 0.0
    %258 = vmatpush1.msra.mxu0 0.0
    %259 = vmatprep.subr.mxu0 0.0
    %260 = vmatpush1.msra.mxu0 0.0
    %261 = vmatprep.subr.mxu0 0.0
    %262 = vmatpush1.msra.mxu0 0.0
    %263 = vmatprep.subr.mxu0 0.0
    %264 = vmatpush1.msra.mxu0 0.0
    %265 = vmatprep.subr.mxu0 0.0
    %266 = vmatpush1.msra.mxu0 0.0
    %267 = vmatprep.subr.mxu0 0.0
    %268 = vmatpush1.msra.mxu0 0.0
    %269 = vmatprep.subr.mxu0 0.0
    %270 = vmatpush1.msra.mxu0 0.0
    %271 = vmatprep.subr.mxu0 0.0
    %272 = vmatpush1.msra.mxu0 0.0
    %273 = vmatprep.subr.mxu0 0.0
    %274 = vmatpush1.msra.mxu0 0.0
    %275 = vmatprep.mubr.f32.mxu0 0.0
    %276 = vmatmul.mubr.f32.gmra.mrb[0].mxu0 %v207
    %v277 = vpop.f32.mrb[0].mxu0
    %v278 = vadd.f32 %v199, %v277
    %v279 = vpop.f32.mrb[0].mxu0
    %280 = vmatprep.mubr.f32.mxu0 0.0
    %281 = vmatmul.mubr.f32.gmra.mrb[0].mxu0 %v209
    %v282 = vpop.f32.mrb[0].mxu0
    %v283 = vadd.f32 %v204, %v282
    %v284 = vpop.f32.mrb[0].mxu0
    %285 = vdwg.mxu0
    %286 = vrot.lane.b32.xlu0 %v28, 112
    %v287 = vpop.permute.xlu0 %286
    %288 = vrot.lane.b32.xlu0 %v29, 112
    %v289 = vpop.permute.xlu0 %288
    %290 = vrot.lane.b32.xlu0 %v116, 126
    %v291 = vpop.permute.xlu0 %290
    %v293 = vsel %vm127, %v287, 0
    %v295 = vsel %vm127, %v289, 0
    %297 = vmatprep.subr.mxu0 0.0
    %298 = vmatpush1.msra.mxu0 %v291
    %299 = vmatprep.subr.mxu0 0.0
    %300 = vmatpush1.msra.mxu0 0.0
    %301 = vmatprep.subr.mxu0 0.0
    %302 = vmatpush1.msra.mxu0 0.0
    %303 = vmatprep.subr.mxu0 0.0
    %304 = vmatpush1.msra.mxu0 0.0
    %305 = vmatprep.subr.mxu0 0.0
    %306 = vmatpush1.msra.mxu0 0.0
    %307 = vmatprep.subr.mxu0 0.0
    %308 = vmatpush1.msra.mxu0 0.0
    %309 = vmatprep.subr.mxu0 0.0
    %310 = vmatpush1.msra.mxu0 0.0
    %311 = vmatprep.subr.mxu0 0.0
    %312 = vmatpush1.msra.mxu0 0.0
    %313 = vmatprep.subr.mxu0 0.0
    %314 = vmatpush1.msra.mxu0 0.0
    %315 = vmatprep.subr.mxu0 0.0
    %316 = vmatpush1.msra.mxu0 0.0
    %317 = vmatprep.subr.mxu0 0.0
    %318 = vmatpush1.msra.mxu0 0.0
    %319 = vmatprep.subr.mxu0 0.0
    %320 = vmatpush1.msra.mxu0 0.0
    %321 = vmatprep.subr.mxu0 0.0
    %322 = vmatpush1.msra.mxu0 0.0
    %323 = vmatprep.subr.mxu0 0.0
    %324 = vmatpush1.msra.mxu0 0.0
    %325 = vmatprep.subr.mxu0 0.0
    %326 = vmatpush1.msra.mxu0 0.0
    %327 = vmatprep.subr.mxu0 0.0
    %328 = vmatpush1.msra.mxu0 0.0
    %329 = vmatprep.subr.mxu0 0.0
    %330 = vmatpush1.msra.mxu0 0.0
    %331 = vmatprep.subr.mxu0 0.0
    %332 = vmatpush1.msra.mxu0 0.0
    %333 = vmatprep.subr.mxu0 0.0
    %334 = vmatpush1.msra.mxu0 0.0
    %335 = vmatprep.subr.mxu0 0.0
    %336 = vmatpush1.msra.mxu0 0.0
    %337 = vmatprep.subr.mxu0 0.0
    %338 = vmatpush1.msra.mxu0 0.0
    %339 = vmatprep.subr.mxu0 0.0
    %340 = vmatpush1.msra.mxu0 0.0
    %341 = vmatprep.subr.mxu0 0.0
    %342 = vmatpush1.msra.mxu0 0.0
    %343 = vmatprep.subr.mxu0 0.0
    %344 = vmatpush1.msra.mxu0 0.0
    %345 = vmatprep.subr.mxu0 0.0
    %346 = vmatpush1.msra.mxu0 0.0
    %347 = vmatprep.subr.mxu0 0.0
    %348 = vmatpush1.msra.mxu0 0.0
    %349 = vmatprep.subr.mxu0 0.0
    %350 = vmatpush1.msra.mxu0 0.0
    %351 = vmatprep.subr.mxu0 0.0
    %352 = vmatpush1.msra.mxu0 0.0
    %353 = vmatprep.subr.mxu0 0.0
    %354 = vmatpush1.msra.mxu0 0.0
    %355 = vmatprep.subr.mxu0 0.0
    %356 = vmatpush1.msra.mxu0 0.0
    %357 = vmatprep.subr.mxu0 0.0
    %358 = vmatpush1.msra.mxu0 0.0
    %359 = vmatprep.subr.mxu0 0.0
    %360 = vmatpush1.msra.mxu0 0.0
    %361 = vmatprep.mubr.f32.mxu0 0.0
    %362 = vmatmul.mubr.f32.gmra.mrb[0].mxu0 %v293
    %v363 = vpop.f32.mrb[0].mxu0
    %v364 = vadd.f32 0.0, %v363
    %v365 = vpop.f32.mrb[0].mxu0
    %366 = vmatprep.mubr.f32.mxu0 0.0
    %367 = vmatmul.mubr.f32.gmra.mrb[0].mxu0 %v295
    %v368 = vpop.f32.mrb[0].mxu0
    %v369 = vadd.f32 0.0, %v368
    %v370 = vpop.f32.mrb[0].mxu0
    %371 = vdwg.mxu0
    %v372 = vadd.f32 %v278, %v364
    %v373 = vadd.f32 %v283, %v369
    %375 = vset.pattern.permute.xlu0 0
    %376 = vperm.xlu0 %375, %v32
    %v377 = vpop.permute.xlu0 %376
    %380 = vset.pattern.permute.xlu0 0
    %381 = vperm.xlu0 %380, %v33
    %v382 = vpop.permute.xlu0 %381
    %v384 = vadd.f32 %v372, %v377
    %v385 = vadd.f32 %v373, %v382
    %vm386 = vcmp.ge.f32.partialorder %v384, 0.0
    %vm387 = vcmp.ge.f32.partialorder %v385, 0.0
    %v388 = vmul.f32 %v384, 0.01
    %v389 = vmul.f32 %v385, 0.01
    %v390 = vsel %vm386, %v384, %v388
    %v391 = vsel %vm387, %v385, %v389
    %394 = vrot.lane.b32.xlu0 %v30, 112
    %v395 = vpop.permute.xlu0 %394
    %396 = vrot.lane.b32.xlu0 %v31, 112
    %v397 = vpop.permute.xlu0 %396
    %400 = vrot.lane.b32.xlu0 %v390, 127
    %v401 = vpop.permute.xlu0 %400
    %402 = vrot.lane.b32.xlu0 %v391, 127
    %v403 = vpop.permute.xlu0 %402
    %vm406 = vcmask 130048
    %v407 = vsel %vm406, %v395, 0
    %v409 = vsel %vm406, %v397, 0
    %411 = vmatprep.subr.mxu0 0.0
    %412 = vmatpush1.msra.mxu0 %v401
    %413 = vmatprep.subr.mxu0 0.0
    %414 = vmatpush1.msra.mxu0 %v403
    %415 = vmatprep.subr.mxu0 0.0
    %416 = vmatpush1.msra.mxu0 0.0
    %417 = vmatprep.subr.mxu0 0.0
    %418 = vmatpush1.msra.mxu0 0.0
    %419 = vmatprep.subr.mxu0 0.0
    %420 = vmatpush1.msra.mxu0 0.0
    %421 = vmatprep.subr.mxu0 0.0
    %422 = vmatpush1.msra.mxu0 0.0
    %423 = vmatprep.subr.mxu0 0.0
    %424 = vmatpush1.msra.mxu0 0.0
    %425 = vmatprep.subr.mxu0 0.0
    %426 = vmatpush1.msra.mxu0 0.0
    %427 = vmatprep.subr.mxu0 0.0
    %428 = vmatpush1.msra.mxu0 0.0
    %429 = vmatprep.subr.mxu0 0.0
    %430 = vmatpush1.msra.mxu0 0.0
    %431 = vmatprep.subr.mxu0 0.0
    %432 = vmatpush1.msra.mxu0 0.0
    %433 = vmatprep.subr.mxu0 0.0
    %434 = vmatpush1.msra.mxu0 0.0
    %435 = vmatprep.subr.mxu0 0.0
    %436 = vmatpush1.msra.mxu0 0.0
    %437 = vmatprep.subr.mxu0 0.0
    %438 = vmatpush1.msra.mxu0 0.0
    %439 = vmatprep.subr.mxu0 0.0
    %440 = vmatpush1.msra.mxu0 0.0
    %441 = vmatprep.subr.mxu0 0.0
    %442 = vmatpush1.msra.mxu0 0.0
    %443 = vmatprep.subr.mxu0 0.0
    %444 = vmatpush1.msra.mxu0 0.0
    %445 = vmatprep.subr.mxu0 0.0
    %446 = vmatpush1.msra.mxu0 0.0
    %447 = vmatprep.subr.mxu0 0.0
    %448 = vmatpush1.msra.mxu0 0.0
    %449 = vmatprep.subr.mxu0 0.0
    %450 = vmatpush1.msra.mxu0 0.0
    %451 = vmatprep.subr.mxu0 0.0
    %452 = vmatpush1.msra.mxu0 0.0
    %453 = vmatprep.subr.mxu0 0.0
    %454 = vmatpush1.msra.mxu0 0.0
    %455 = vmatprep.subr.mxu0 0.0
    %456 = vmatpush1.msra.mxu0 0.0
    %457 = vmatprep.subr.mxu0 0.0
    %458 = vmatpush1.msra.mxu0 0.0
    %459 = vmatprep.subr.mxu0 0.0
    %460 = vmatpush1.msra.mxu0 0.0
    %461 = vmatprep.subr.mxu0 0.0
    %462 = vmatpush1.msra.mxu0 0.0
    %463 = vmatprep.subr.mxu0 0.0
    %464 = vmatpush1.msra.mxu0 0.0
    %465 = vmatprep.subr.mxu0 0.0
    %466 = vmatpush1.msra.mxu0 0.0
    %467 = vmatprep.subr.mxu0 0.0
    %468 = vmatpush1.msra.mxu0 0.0
    %469 = vmatprep.subr.mxu0 0.0
    %470 = vmatpush1.msra.mxu0 0.0
    %471 = vmatprep.subr.mxu0 0.0
    %472 = vmatpush1.msra.mxu0 0.0
    %473 = vmatprep.subr.mxu0 0.0
    %474 = vmatpush1.msra.mxu0 0.0
    %475 = vmatprep.mubr.f32.mxu0 0.0
    %476 = vmatmul.mubr.f32.gmra.mrb[0].mxu0 %v407
    %v477 = vpop.f32.mrb[0].mxu0
    %v478 = vadd.f32 0.0, %v477
    %v479 = vpop.f32.mrb[0].mxu0
    %480 = vmatprep.mubr.f32.mxu0 0.0
    %481 = vmatmul.mubr.f32.gmra.mrb[0].mxu0 %v409
    %v482 = vpop.f32.mrb[0].mxu0
    %v483 = vadd.f32 0.0, %v482
    %v484 = vpop.f32.mrb[0].mxu0
    %485 = vdwg.mxu0
    %v486 = vsel %vm406, %v30, 0
    %v488 = vsel %vm406, %v31, 0
    %490 = vmatprep.subr.mxu0 0.0
    %491 = vmatpush1.msra.mxu0 %v390
    %492 = vmatprep.subr.mxu0 0.0
    %493 = vmatpush1.msra.mxu0 %v391
    %494 = vmatprep.subr.mxu0 0.0
    %495 = vmatpush1.msra.mxu0 0.0
    %496 = vmatprep.subr.mxu0 0.0
    %497 = vmatpush1.msra.mxu0 0.0
    %498 = vmatprep.subr.mxu0 0.0
    %499 = vmatpush1.msra.mxu0 0.0
    %500 = vmatprep.subr.mxu0 0.0
    %501 = vmatpush1.msra.mxu0 0.0
    %502 = vmatprep.subr.mxu0 0.0
    %503 = vmatpush1.msra.mxu0 0.0
    %504 = vmatprep.subr.mxu0 0.0
    %505 = vmatpush1.msra.mxu0 0.0
    %506 = vmatprep.subr.mxu0 0.0
    %507 = vmatpush1.msra.mxu0 0.0
    %508 = vmatprep.subr.mxu0 0.0
    %509 = vmatpush1.msra.mxu0 0.0
    %510 = vmatprep.subr.mxu0 0.0
    %511 = vmatpush1.msra.mxu0 0.0
    %512 = vmatprep.subr.mxu0 0.0
    %513 = vmatpush1.msra.mxu0 0.0
    %514 = vmatprep.subr.mxu0 0.0
    %515 = vmatpush1.msra.mxu0 0.0
    %516 = vmatprep.subr.mxu0 0.0
    %517 = vmatpush1.msra.mxu0 0.0
    %518 = vmatprep.subr.mxu0 0.0
    %519 = vmatpush1.msra.mxu0 0.0
    %520 = vmatprep.subr.mxu0 0.0
    %521 = vmatpush1.msra.mxu0 0.0
    %522 = vmatprep.subr.mxu0 0.0
    %523 = vmatpush1.msra.mxu0 0.0
    %524 = vmatprep.subr.mxu0 0.0
    %525 = vmatpush1.msra.mxu0 0.0
    %526 = vmatprep.subr.mxu0 0.0
    %527 = vmatpush1.msra.mxu0 0.0
    %528 = vmatprep.subr.mxu0 0.0
    %529 = vmatpush1.msra.mxu0 0.0
    %530 = vmatprep.subr.mxu0 0.0
    %531 = vmatpush1.msra.mxu0 0.0
    %532 = vmatprep.subr.mxu0 0.0
    %533 = vmatpush1.msra.mxu0 0.0
    %534 = vmatprep.subr.mxu0 0.0
    %535 = vmatpush1.msra.mxu0 0.0
    %536 = vmatprep.subr.mxu0 0.0
    %537 = vmatpush1.msra.mxu0 0.0
    %538 = vmatprep.subr.mxu0 0.0
    %539 = vmatpush1.msra.mxu0 0.0
    %540 = vmatprep.subr.mxu0 0.0
    %541 = vmatpush1.msra.mxu0 0.0
    %542 = vmatprep.subr.mxu0 0.0
    %543 = vmatpush1.msra.mxu0 0.0
    %544 = vmatprep.subr.mxu0 0.0
    %545 = vmatpush1.msra.mxu0 0.0
    %546 = vmatprep.subr.mxu0 0.0
    %547 = vmatpush1.msra.mxu0 0.0
    %548 = vmatprep.subr.mxu0 0.0
    %549 = vmatpush1.msra.mxu0 0.0
    %550 = vmatprep.subr.mxu0 0.0
    %551 = vmatpush1.msra.mxu0 0.0
    %552 = vmatprep.subr.mxu0 0.0
    %553 = vmatpush1.msra.mxu0 0.0
    %554 = vmatprep.mubr.f32.mxu0 0.0
    %555 = vmatmul.mubr.f32.gmra.mrb[0].mxu0 %v486
    %v556 = vpop.f32.mrb[0].mxu0
    %v557 = vadd.f32 %v478, %v556
    %v558 = vpop.f32.mrb[0].mxu0
    %559 = vmatprep.mubr.f32.mxu0 0.0
    %560 = vmatmul.mubr.f32.gmra.mrb[0].mxu0 %v488
    %v561 = vpop.f32.mrb[0].mxu0
    %v562 = vadd.f32 %v483, %v561
    %v563 = vpop.f32.mrb[0].mxu0
    %564 = vdwg.mxu0
    %565 = vrot.lane.b32.xlu0 %v30, 96
    %v566 = vpop.permute.xlu0 %565
    %567 = vrot.lane.b32.xlu0 %v31, 96
    %v568 = vpop.permute.xlu0 %567
    %569 = vrot.lane.b32.xlu0 %v390, 126
    %v570 = vpop.permute.xlu0 %569
    %571 = vrot.lane.b32.xlu0 %v391, 126
    %v572 = vpop.permute.xlu0 %571
    %v575 = vsel %vm406, %v566, 0
    %v577 = vsel %vm406, %v568, 0
    %579 = vmatprep.subr.mxu0 0.0
    %580 = vmatpush1.msra.mxu0 %v570
    %581 = vmatprep.subr.mxu0 0.0
    %582 = vmatpush1.msra.mxu0 %v572
    %583 = vmatprep.subr.mxu0 0.0
    %584 = vmatpush1.msra.mxu0 0.0
    %585 = vmatprep.subr.mxu0 0.0
    %586 = vmatpush1.msra.mxu0 0.0
    %587 = vmatprep.subr.mxu0 0.0
    %588 = vmatpush1.msra.mxu0 0.0
    %589 = vmatprep.subr.mxu0 0.0
    %590 = vmatpush1.msra.mxu0 0.0
    %591 = vmatprep.subr.mxu0 0.0
    %592 = vmatpush1.msra.mxu0 0.0
    %593 = vmatprep.subr.mxu0 0.0
    %594 = vmatpush1.msra.mxu0 0.0
    %595 = vmatprep.subr.mxu0 0.0
    %596 = vmatpush1.msra.mxu0 0.0
    %597 = vmatprep.subr.mxu0 0.0
    %598 = vmatpush1.msra.mxu0 0.0
    %599 = vmatprep.subr.mxu0 0.0
    %600 = vmatpush1.msra.mxu0 0.0
    %601 = vmatprep.subr.mxu0 0.0
    %602 = vmatpush1.msra.mxu0 0.0
    %603 = vmatprep.subr.mxu0 0.0
    %604 = vmatpush1.msra.mxu0 0.0
    %605 = vmatprep.subr.mxu0 0.0
    %606 = vmatpush1.msra.mxu0 0.0
    %607 = vmatprep.subr.mxu0 0.0
    %608 = vmatpush1.msra.mxu0 0.0
    %609 = vmatprep.subr.mxu0 0.0
    %610 = vmatpush1.msra.mxu0 0.0
    %611 = vmatprep.subr.mxu0 0.0
    %612 = vmatpush1.msra.mxu0 0.0
    %613 = vmatprep.subr.mxu0 0.0
    %614 = vmatpush1.msra.mxu0 0.0
    %615 = vmatprep.subr.mxu0 0.0
    %616 = vmatpush1.msra.mxu0 0.0
    %617 = vmatprep.subr.mxu0 0.0
    %618 = vmatpush1.msra.mxu0 0.0
    %619 = vmatprep.subr.mxu0 0.0
    %620 = vmatpush1.msra.mxu0 0.0
    %621 = vmatprep.subr.mxu0 0.0
    %622 = vmatpush1.msra.mxu0 0.0
    %623 = vmatprep.subr.mxu0 0.0
    %624 = vmatpush1.msra.mxu0 0.0
    %625 = vmatprep.subr.mxu0 0.0
    %626 = vmatpush1.msra.mxu0 0.0
    %627 = vmatprep.subr.mxu0 0.0
    %628 = vmatpush1.msra.mxu0 0.0
    %629 = vmatprep.subr.mxu0 0.0
    %630 = vmatpush1.msra.mxu0 0.0
    %631 = vmatprep.subr.mxu0 0.0
    %632 = vmatpush1.msra.mxu0 0.0
    %633 = vmatprep.subr.mxu0 0.0
    %634 = vmatpush1.msra.mxu0 0.0
    %635 = vmatprep.subr.mxu0 0.0
    %636 = vmatpush1.msra.mxu0 0.0
    %637 = vmatprep.subr.mxu0 0.0
    %638 = vmatpush1.msra.mxu0 0.0
    %639 = vmatprep.subr.mxu0 0.0
    %640 = vmatpush1.msra.mxu0 0.0
    %641 = vmatprep.subr.mxu0 0.0
    %642 = vmatpush1.msra.mxu0 0.0
    %643 = vmatprep.mubr.f32.mxu0 0.0
    %644 = vmatmul.mubr.f32.gmra.mrb[0].mxu0 %v575
    %v645 = vpop.f32.mrb[0].mxu0
    %v646 = vadd.f32 0.0, %v645
    %v647 = vpop.f32.mrb[0].mxu0
    %648 = vmatprep.mubr.f32.mxu0 0.0
    %649 = vmatmul.mubr.f32.gmra.mrb[0].mxu0 %v577
    %v650 = vpop.f32.mrb[0].mxu0
    %v651 = vadd.f32 0.0, %v650
    %v652 = vpop.f32.mrb[0].mxu0
    %653 = vdwg.mxu0
    %v654 = vadd.f32 %v557, %v646
    %v655 = vadd.f32 %v562, %v651
    %656 = vset.pattern.permute.xlu0 1
    %657 = vperm.xlu0 %656, %v32
    %v658 = vpop.permute.xlu0 %657
    %660 = vset.pattern.permute.xlu0 1
    %661 = vperm.xlu0 %660, %v33
    %v662 = vpop.permute.xlu0 %661
    %v664 = vadd.f32 %v654, %v658
    %v665 = vadd.f32 %v655, %v662
    %vm666 = vcmp.ge.f32.partialorder %v664, 0.0
    %vm667 = vcmp.ge.f32.partialorder %v665, 0.0
    %v668 = vmul.f32 %v664, 0.01
    %v669 = vmul.f32 %v665, 0.01
    %v670 = vsel %vm666, %v664, %v668
    %v671 = vsel %vm667, %v665, %v669
    %674 = vrot.lane.b32.xlu0 %v670, 127
    %v675 = vpop.permute.xlu0 %674
    %676 = vrot.lane.b32.xlu0 %v671, 127
    %v677 = vpop.permute.xlu0 %676
    %v680 = vmax.f32 %v670, %v675
    %v681 = vmax.f32 %v671, %v677
    %682 = vrot.lane.b32.xlu0 %v32, 126
    %v683 = vpop.permute.xlu0 %682
    %684 = vrot.lane.b32.xlu0 %v33, 126
    %v685 = vpop.permute.xlu0 %684
    %v688 = vmul.f32 %v680, %v683
    %v689 = vmul.f32 %v681, %v685
    %v691 = vsel %vm406, %v34, 0
    %693 = vmatprep.subr.mxu0 0.0
    %694 = vmatpush1.msra.mxu0 %v688
    %695 = vmatprep.subr.mxu0 0.0
    %696 = vmatpush1.msra.mxu0 %v689
    %697 = vmatprep.subr.mxu0 0.0
    %698 = vmatpush1.msra.mxu0 0.0
    %699 = vmatprep.subr.mxu0 0.0
    %700 = vmatpush1.msra.mxu0 0.0
    %701 = vmatprep.subr.mxu0 0.0
    %702 = vmatpush1.msra.mxu0 0.0
    %703 = vmatprep.subr.mxu0 0.0
    %704 = vmatpush1.msra.mxu0 0.0
    %705 = vmatprep.subr.mxu0 0.0
    %706 = vmatpush1.msra.mxu0 0.0
    %707 = vmatprep.subr.mxu0 0.0
    %708 = vmatpush1.msra.mxu0 0.0
    %709 = vmatprep.subr.mxu0 0.0
    %710 = vmatpush1.msra.mxu0 0.0
    %711 = vmatprep.subr.mxu0 0.0
    %712 = vmatpush1.msra.mxu0 0.0
    %713 = vmatprep.subr.mxu0 0.0
    %714 = vmatpush1.msra.mxu0 0.0
    %715 = vmatprep.subr.mxu0 0.0
    %716 = vmatpush1.msra.mxu0 0.0
    %717 = vmatprep.subr.mxu0 0.0
    %718 = vmatpush1.msra.mxu0 0.0
    %719 = vmatprep.subr.mxu0 0.0
    %720 = vmatpush1.msra.mxu0 0.0
    %721 = vmatprep.subr.mxu0 0.0
    %722 = vmatpush1.msra.mxu0 0.0
    %723 = vmatprep.subr.mxu0 0.0
    %724 = vmatpush1.msra.mxu0 0.0
    %725 = vmatprep.subr.mxu0 0.0
    %726 = vmatpush1.msra.mxu0 0.0
    %727 = vmatprep.subr.mxu0 0.0
    %728 = vmatpush1.msra.mxu0 0.0
    %729 = vmatprep.subr.mxu0 0.0
    %730 = vmatpush1.msra.mxu0 0.0
    %731 = vmatprep.subr.mxu0 0.0
    %732 = vmatpush1.msra.mxu0 0.0
    %733 = vmatprep.subr.mxu0 0.0
    %734 = vmatpush1.msra.mxu0 0.0
    %735 = vmatprep.subr.mxu0 0.0
    %736 = vmatpush1.msra.mxu0 0.0
    %737 = vmatprep.subr.mxu0 0.0
    %738 = vmatpush1.msra.mxu0 0.0
    %739 = vmatprep.subr.mxu0 0.0
    %740 = vmatpush1.msra.mxu0 0.0
    %741 = vmatprep.subr.mxu0 0.0
    %742 = vmatpush1.msra.mxu0 0.0
    %743 = vmatprep.subr.mxu0 0.0
    %744 = vmatpush1.msra.mxu0 0.0
    %745 = vmatprep.subr.mxu0 0.0
    %746 = vmatpush1.msra.mxu0 0.0
    %747 = vmatprep.subr.mxu0 0.0
    %748 = vmatpush1.msra.mxu0 0.0
    %749 = vmatprep.subr.mxu0 0.0
    %750 = vmatpush1.msra.mxu0 0.0
    %751 = vmatprep.subr.mxu0 0.0
    %752 = vmatpush1.msra.mxu0 0.0
    %753 = vmatprep.subr.mxu0 0.0
    %754 = vmatpush1.msra.mxu0 0.0
    %755 = vmatprep.subr.mxu0 0.0
    %756 = vmatpush1.msra.mxu0 0.0
    %757 = vmatprep.mubr.f32.mxu0 0.0
    %758 = vmatmul.mubr.f32.gmra.mrb[0].mxu0 %v691
    %v759 = vpop.f32.mrb[0].mxu0
    %v760 = vadd.f32 0.0, %v759
    %v761 = vpop.f32.mrb[0].mxu0
    %762 = vdwg.mxu0
    %vm763 = vcmask 220160
    %v764 = vsel %vm763, %v760, 0.0
    %765 = vadd.xlane.f32.xlu0 %v764
    %v766 = vpop.xlane.xlu0 %765
    %767 = vst [vmem:[%s2] sm:$0xff] %v766
    // Predicated region
    $region14: #{qnetwork_cnn_forward.1} parent=1 // pred_check
      _
    $region15: #{qnetwork_cnn_forward.1} parent=1 // pred_check_branch
      %769 = sbr.rel (0) target = $region17
    $region16: #{qnetwork_cnn_forward.1} parent=1 // pred_region
      _
    $region17: #{qnetwork_cnn_forward.1} parent=1 // pred_fallthru
      _
    // Predicated region
    $region18: #{qnetwork_cnn_forward.1} parent=1 // pred_check
      _
    $region19: #{qnetwork_cnn_forward.1} parent=1 // pred_check_branch
      %771 = sbr.rel (0) target = $region21
    $region20: #{qnetwork_cnn_forward.1} parent=1 // pred_region
      _
    $region21: #{qnetwork_cnn_forward.1} parent=1 // pred_fallthru
      _
    %772 = vsyncpa [#allocation3], 1

</llo_original>
